<compile_context>
chip_gen: v6e
topology: v6e:2x2x1
jax: 0.10.0
libtpu: 0.0.40
codegen_flags: <defaults>
</compile_context>

<pallas_src>
import functools

import jax
import jax.numpy as jnp
from jax.experimental import pallas as pl
from jax.experimental.pallas import tpu as pltpu

_LANE = 128

# ---- one-time hardware detection (device kind is fixed for the process) ----
try:
    _DEVICE_KIND = jax.devices()[0].device_kind.lower()
except Exception:  # pragma: no cover
    _DEVICE_KIND = ""
_IS_V7 = "v7" in _DEVICE_KIND
_IS_V5 = "v5" in _DEVICE_KIND
# bf16 bias+tanh only where VPU/EUP have a native bf16 path (v6e / v7x).
_TANH_DTYPE = jnp.float32 if _IS_V5 else jnp.bfloat16
_TM_CAP = 1024 if _IS_V7 else 2048


def _round_up(x, m):
    return (x + m - 1) // m * m


def prepare_head_params(w_dense, b_dense, w_out, b_out):
    """One-time (parameter-load-time) conversion to MXU-friendly operands.

    Call once and reuse the result: keeping the bf16 cast / bias reshape out of
    the per-call jit avoids re-reading ~4.7 MiB f32 and re-writing ~2.4 MiB bf16
    of weights (plus two extra XLA fusions) on every call of a ~2 us kernel.

    Weights are stored [in, out] so the kernel computes x @ W.
    """
    h = w_dense.shape[1]
    num_labels = w_out.shape[1]
    return (
        jnp.asarray(w_dense, jnp.bfloat16),                  # [2H, H]
        jnp.asarray(b_dense, jnp.float32).reshape(1, h),     # [1, H]
        jnp.asarray(w_out, jnp.bfloat16),                    # [H, num_labels]
        jnp.asarray(b_out, jnp.float32).reshape(1, num_labels),
    )


def _head_kernel(xe_ref, xo_ref, w1_ref, b1_ref, w2_ref, b2_ref, o_ref, acc_ref,
                 *, act_dtype):
    # xe_ref / xo_ref : [TM, H]   CLS rows of the even / odd example of each pair
    # w1_ref          : [2H, H]   dense weight, [in, out], bf16
    # b1_ref          : [1, H]    f32
    # w2_ref          : [H, L]    out_proj weight, bf16 (L = num_labels)
    # b2_ref          : [1, L]    f32
    # o_ref           : [TM, L]   f32
    # acc_ref         : [TM, H]   f32 VMEM scratch accumulator
    h_dim = w1_ref.shape[1]

    # TODO(synk): nn.Dropout is identity in eval mode; training-mode RNG masking
    # is intentionally not implemented.
    xe = xe_ref[...].astype(jnp.bfloat16)
    xo = xo_ref[...].astype(jnp.bfloat16)

    # dense(concat(xe, xo)) == xe @ W_top + xo @ W_bot, accumulated in-place
    # (static ref slices are free; the += form lets Mosaic keep the second
    #  matmul accumulating in the MXU result buffer on v7x).
    acc_ref[...] = jnp.dot(xe, w1_ref[pl.ds(0, h_dim), :],
                           preferred_element_type=jnp.float32)
    acc_ref[...] += jnp.dot(xo, w1_ref[pl.ds(h_dim, h_dim), :],
                            preferred_element_type=jnp.float32)

    # bias + tanh (bf16 on v6e/v7x, f32 on v5e), then the tiny output projection.
    h = jnp.tanh((acc_ref[...] + b1_ref[...]).astype(act_dtype))
    out = jnp.dot(h.astype(jnp.bfloat16), w2_ref[...],
                  preferred_element_type=jnp.float32) + b2_ref[...]
    o_ref[...] = out.astype(o_ref.dtype)


@jax.jit
def roberta_classification_head(features, w1, b1, w2, b2):
    """features: [B, T, H] f32. (w1, b1, w2, b2) from `prepare_head_params`.
    Returns logits [B//2, num_labels] in f32."""
    B, T, H = features.shape
    assert B % 2 == 0, "batch must be even (pairs of examples are concatenated)"
    B2 = B // 2
    num_labels = w2.shape[1]

    # Pair view: row j = concat(features[2j].ravel(), features[2j+1].ravel()).
    # Row-major contiguous reshape -> metadata only, no HBM data movement.
    feats_pairs = features.reshape(B2, 2 * T * H)

    # ---- static tile selection (Python ints, trace time only) ----
    act_bytes = B2 * 2 * H * features.dtype.itemsize         # CLS rows read
    weight_bytes = (2 * H * H + H * num_labels) * 2          # bf16 weights read
    if _IS_V7 and B2 > 16 and act_bytes > 2 * weight_bytes:
        # Split into >= 2 grid steps so the "parallel" axis shards across both
        # v7x TensorCores (only worth it when activation traffic dominates the
        # re-fetched constant weight blocks).
        tm = min(_TM_CAP, max(8, _round_up(pl.cdiv(B2, 2), 8)))
    else:
        tm = min(_TM_CAP, B2)
    grid = (pl.cdiv(B2, tm),)

    # ---- VMEM budget derived from the actual per-step footprint ----
    n_pad = _round_up(num_labels, _LANE)  # lane-padded layout of the tiny tensors
    footprint = (
        2 * 2 * tm * H * 4                        # xe / xo blocks, double-buffered
        + 2 * (2 * H * H * 2 + 8 * H * 4)         # w1 + b1 (double-buffered)
        + 2 * (H * n_pad * 2 + 8 * n_pad * 4)     # w2 + b2
        + 2 * tm * n_pad * 4                      # output block
        + tm * H * 4                              # f32 accumulator scratch
    )
    vmem_limit = max(8 * 1024 * 1024,
                     min(int(footprint * 1.5) + (1 << 20),
                         (48 if _IS_V7 else 100) * 1024 * 1024))

    kernel = functools.partial(_head_kernel, act_dtype=_TANH_DTYPE)

    return pl.pallas_call(
        kernel,
        out_shape=jax.ShapeDtypeStruct((B2, num_labels), jnp.float32),
        grid_spec=pltpu.PrefetchScalarGridSpec(
            num_scalar_prefetch=0,
            grid=grid,
            in_specs=[
                # even-example CLS rows: columns [0, H) of the pair view
                pl.BlockSpec((tm, H), lambda i: (i, 0)),
                # odd-example CLS rows: columns [T*H, T*H + H) -> column block T
                pl.BlockSpec((tm, H), lambda i: (i, T)),
                pl.BlockSpec((2 * H, H), lambda i: (0, 0)),
                pl.BlockSpec((1, H), lambda i: (0, 0)),
                pl.BlockSpec((H, num_labels), lambda i: (0, 0)),
                pl.BlockSpec((1, num_labels), lambda i: (0, 0)),
            ],
            out_specs=pl.BlockSpec((tm, num_labels), lambda i: (i, 0)),
            scratch_shapes=[pltpu.VMEM((tm, H), jnp.float32)],
        ),
        compiler_params=pltpu.CompilerParams(
            dimension_semantics=("parallel",),
            vmem_limit_bytes=vmem_limit,
        ),
    )(feats_pairs, feats_pairs, w1, b1, w2, b2)


if __name__ == "__main__":
    # Small, module-consistent, TPU-friendly shapes:
    # batch=8 (-> 4 pairs), seq=8, hidden=128 (lane-aligned), 2 labels.
    B, T, H = 8, 8, 128
    NUM_LABELS = 2

    key = jax.random.PRNGKey(0)
    k_feat, k_w1, k_b1, k_w2, k_b2 = jax.random.split(key, 5)

    features = jax.random.normal(k_feat, (B, T, H), dtype=jnp.float32)
    # Linear(2H -> H) and Linear(H -> NUM_LABELS), stored [in, out] for x @ W.
    w_dense = jax.random.normal(k_w1, (2 * H, H), dtype=jnp.float32) * 0.02
    b_dense = jax.random.normal(k_b1, (H,), dtype=jnp.float32) * 0.02
    w_out = jax.random.normal(k_w2, (H, NUM_LABELS), dtype=jnp.float32) * 0.02
    b_out = jax.random.normal(k_b2, (NUM_LABELS,), dtype=jnp.float32) * 0.02

    # One-time parameter prep (outside the per-call jit path).
    params = jax.block_until_ready(
        prepare_head_params(w_dense, b_dense, w_out, b_out))

    logits = roberta_classification_head(features, *params)
    logits = jax.block_until_ready(logits)

    # Pure-JAX f32 reference (kernel uses bf16 MXU operands, f32 accumulation).
    x_ref = features[:, 0, :].reshape(B // 2, 2 * H)
    ref = jnp.tanh(x_ref @ w_dense + b_dense) @ w_out + b_out
    assert logits.shape == (B // 2, NUM_LABELS)
    assert jnp.allclose(logits, ref, atol=2e-2, rtol=2e-2), (
        float(jnp.max(jnp.abs(logits - ref))))

    print("KERNEL_OK")
</pallas_src>

<mosaic_0001>
module attributes {stable_mosaic.version = 11 : i64} {
  func.func @_head_kernel(%arg0: i32, %arg1: memref<4x128xf32, #tpu.memory_space<vmem>>, %arg2: memref<4x128xf32, #tpu.memory_space<vmem>>, %arg3: memref<256x128xbf16, #tpu.memory_space<vmem>>, %arg4: memref<1x128xf32, #tpu.memory_space<vmem>>, %arg5: memref<128x2xbf16, #tpu.memory_space<vmem>>, %arg6: memref<1x2xf32, #tpu.memory_space<vmem>>, %arg7: memref<4x2xf32, #tpu.memory_space<vmem>>, %arg8: memref<4x128xf32, #tpu.memory_space<vmem>>) attributes {dimension_semantics = [#tpu.dimension_semantics<parallel>], iteration_bounds = array<i64: 1>, scalar_prefetch = 0 : i64, scratch_operands = 1 : i64, tpu.core_type = #tpu.core_type<tc>, window_params = [{transform_indices = @transform_0, window_bounds = array<i64: 4, 128>}, {transform_indices = @transform_1, window_bounds = array<i64: 4, 128>}, {pipeline_mode = #tpu.pipeline_mode<synchronous>, transform_indices = @transform_2, window_bounds = array<i64: 256, 128>}, {pipeline_mode = #tpu.pipeline_mode<synchronous>, transform_indices = @transform_3, window_bounds = array<i64: 1, 128>}, {pipeline_mode = #tpu.pipeline_mode<synchronous>, transform_indices = @transform_4, window_bounds = array<i64: 128, 2>}, {pipeline_mode = #tpu.pipeline_mode<synchronous>, transform_indices = @transform_5, window_bounds = array<i64: 1, 2>}, {transform_indices = @transform_6, window_bounds = array<i64: 4, 2>}]} {
    %c0 = arith.constant 0 : index
    %c0_0 = arith.constant 0 : index
    %0 = vector.load %arg1[%c0, %c0_0] : memref<4x128xf32, #tpu.memory_space<vmem>>, vector<4x128xf32>
    %1 = arith.truncf %0 : vector<4x128xf32> to vector<4x128xbf16>
    %c0_1 = arith.constant 0 : index
    %c0_2 = arith.constant 0 : index
    %2 = vector.load %arg2[%c0_1, %c0_2] : memref<4x128xf32, #tpu.memory_space<vmem>>, vector<4x128xf32>
    %3 = arith.truncf %2 : vector<4x128xf32> to vector<4x128xbf16>
    %c0_3 = arith.constant 0 : index
    %c0_4 = arith.constant 0 : index
    %4 = vector.load %arg3[%c0_3, %c0_4] : memref<256x128xbf16, #tpu.memory_space<vmem>>, vector<128x128xbf16>
    %cst = arith.constant dense<0.000000e+00> : vector<4x128xf32>
    %5 = tpu.matmul %1, %4, %cst {dimension_numbers = #tpu.dot_dimension_numbers<[1], [0], [0], [1], [0, 0, 1, 1], [], []>} : vector<4x128xbf16>, vector<128x128xbf16>, vector<4x128xf32> -> vector<4x128xf32>
    %c0_5 = arith.constant 0 : index
    %c0_6 = arith.constant 0 : index
    %6 = vector.load %arg8[%c0_5, %c0_6] : memref<4x128xf32, #tpu.memory_space<vmem>>, vector<4x128xf32>
    tpu.vector_store %arg8[%c0_5, %c0_6], %5 {strides = array<i32>} : memref<4x128xf32, #tpu.memory_space<vmem>>, vector<4x128xf32>,
    %c0_7 = arith.constant 0 : index
    %c0_8 = arith.constant 0 : index
    %7 = vector.load %arg8[%c0_7, %c0_8] : memref<4x128xf32, #tpu.memory_space<vmem>>, vector<4x128xf32>
    %c128 = arith.constant 128 : index
    %c0_9 = arith.constant 0 : index
    %8 = vector.load %arg3[%c128, %c0_9] : memref<256x128xbf16, #tpu.memory_space<vmem>>, vector<128x128xbf16>
    %cst_10 = arith.constant dense<0.000000e+00> : vector<4x128xf32>
    %9 = tpu.matmul %3, %8, %cst_10 {dimension_numbers = #tpu.dot_dimension_numbers<[1], [0], [0], [1], [0, 0, 1, 1], [], []>} : vector<4x128xbf16>, vector<128x128xbf16>, vector<4x128xf32> -> vector<4x128xf32>
    %10 = arith.addf %7, %9 : vector<4x128xf32>
    %c0_11 = arith.constant 0 : index
    %c0_12 = arith.constant 0 : index
    %11 = vector.load %arg8[%c0_11, %c0_12] : memref<4x128xf32, #tpu.memory_space<vmem>>, vector<4x128xf32>
    tpu.vector_store %arg8[%c0_11, %c0_12], %10 {strides = array<i32>} : memref<4x128xf32, #tpu.memory_space<vmem>>, vector<4x128xf32>,
    %c0_13 = arith.constant 0 : index
    %c0_14 = arith.constant 0 : index
    %12 = vector.load %arg8[%c0_13, %c0_14] : memref<4x128xf32, #tpu.memory_space<vmem>>, vector<4x128xf32>
    %c0_15 = arith.constant 0 : index
    %c0_16 = arith.constant 0 : index
    %13 = vector.load %arg4[%c0_15, %c0_16] : memref<1x128xf32, #tpu.memory_space<vmem>>, vector<1x128xf32>
    %14 = vector.broadcast %13 : vector<1x128xf32> to vector<4x128xf32>
    %15 = arith.addf %12, %14 : vector<4x128xf32>
    %16 = arith.truncf %15 : vector<4x128xf32> to vector<4x128xbf16>
    %17 = math.tanh %16 : vector<4x128xbf16>
    %c0_17 = arith.constant 0 : index
    %c0_18 = arith.constant 0 : index
    %18 = vector.load %arg5[%c0_17, %c0_18] : memref<128x2xbf16, #tpu.memory_space<vmem>>, vector<128x2xbf16>
    %cst_19 = arith.constant dense<0.000000e+00> : vector<4x2xf32>
    %19 = tpu.matmul %17, %18, %cst_19 {dimension_numbers = #tpu.dot_dimension_numbers<[1], [0], [0], [1], [0, 0, 1, 1], [], []>} : vector<4x128xbf16>, vector<128x2xbf16>, vector<4x2xf32> -> vector<4x2xf32>
    %c0_20 = arith.constant 0 : index
    %c0_21 = arith.constant 0 : index
    %20 = vector.load %arg6[%c0_20, %c0_21] : memref<1x2xf32, #tpu.memory_space<vmem>>, vector<1x2xf32>
    %21 = vector.broadcast %20 : vector<1x2xf32> to vector<4x2xf32>
    %22 = arith.addf %19, %21 : vector<4x2xf32>
    %c0_22 = arith.constant 0 : index
    %c0_23 = arith.constant 0 : index
    %23 = vector.load %arg7[%c0_22, %c0_23] : memref<4x2xf32, #tpu.memory_space<vmem>>, vector<4x2xf32>
    tpu.vector_store %arg7[%c0_22, %c0_23], %22 {strides = array<i32>} : memref<4x2xf32, #tpu.memory_space<vmem>>, vector<4x2xf32>,
    return
  }
  func.func @transform_0(%arg0: i32) -> (i32, i32) {
    %c0_i32 = arith.constant 0 : i32
    %c0_i32_0 = arith.constant 0 : i32
    return %arg0, %c0_i32 : i32, i32
  }
  func.func @transform_1(%arg0: i32) -> (i32, i32) {
    %c8_i32 = arith.constant 8 : i32
    %c0_i32 = arith.constant 0 : i32
    return %arg0, %c8_i32 : i32, i32
  }
  func.func @transform_2(%arg0: i32) -> (i32, i32) {
    %c0_i32 = arith.constant 0 : i32
    %c0_i32_0 = arith.constant 0 : i32
    %c0_i32_1 = arith.constant 0 : i32
    return %c0_i32, %c0_i32_0 : i32, i32
  }
  func.func @transform_3(%arg0: i32) -> (i32, i32) {
    %c0_i32 = arith.constant 0 : i32
    %c0_i32_0 = arith.constant 0 : i32
    %c0_i32_1 = arith.constant 0 : i32
    return %c0_i32, %c0_i32_0 : i32, i32
  }
  func.func @transform_4(%arg0: i32) -> (i32, i32) {
    %c0_i32 = arith.constant 0 : i32
    %c0_i32_0 = arith.constant 0 : i32
    %c0_i32_1 = arith.constant 0 : i32
    return %c0_i32, %c0_i32_0 : i32, i32
  }
  func.func @transform_5(%arg0: i32) -> (i32, i32) {
    %c0_i32 = arith.constant 0 : i32
    %c0_i32_0 = arith.constant 0 : i32
    %c0_i32_1 = arith.constant 0 : i32
    return %c0_i32, %c0_i32_0 : i32, i32
  }
  func.func @transform_6(%arg0: i32) -> (i32, i32) {
    %c0_i32 = arith.constant 0 : i32
    %c0_i32_0 = arith.constant 0 : i32
    return %arg0, %c0_i32 : i32, i32
  }
}

</mosaic_0001>

<llo_original>
// kernel: roberta_classification_head.1
$region0: #{roberta_classification_head.1}
  #allocation0 [shape = 'u32[]', space=smem, size = 0x4, offset = 0x4, fixed_abs, tag = 'smem constant byte address 0x4 - core index']
  #allocation1 [shape = 'u32[144,128]{1,0:T(1,128)}', space=vmem, size = 0x12000, scoped, tag = 'internal scratch']
  #allocation2 [shape = 'f32[4,128]{1,0:T(4,128)}', space=vmem, size = 0x800, scoped, tag = 'scratch operand']
  %s0 = inlined_call_operand.vmem [shape: f32[4,2048], index: 0, kind: input, shape index: {}, may-alias: {0,1}]
  %s1 = inlined_call_operand.vmem [shape: f32[4,2048], index: 1, kind: input, shape index: {}, may-alias: {0,1}]
  %s2 = inlined_call_operand.vmem [shape: bf16[256,128], index: 2, kind: input, shape index: {}]
  %s3 = inlined_call_operand.vmem [shape: f32[1,128], index: 3, kind: input, shape index: {}]
  %s4 = inlined_call_operand.vmem [shape: bf16[128,2], index: 4, kind: input, shape index: {}]
  %s5 = inlined_call_operand.vmem [shape: f32[1,2], index: 5, kind: input, shape index: {}]
  %s6 = inlined_call_operand.vmem [shape: f32[4,2], index: 6, kind: output, shape index: {}]
  %s7 = sld [smem:[#allocation0]]
  $region34: #{roberta_classification_head.1} parent=0
    _
  %s9 = ssub.s32 1, %s7
  %s10 = scalar_select 0, %s9, %s7
  // Predicated region
  $region2: #{roberta_classification_head.1} parent=0 // pred_check
    _
  $region3: #{roberta_classification_head.1} parent=0 // pred_check_branch
    %12 = sbr.rel (0) target = $region5
  $region4: #{roberta_classification_head.1} parent=0 // pred_region
    _
  $region5: #{roberta_classification_head.1} parent=0 // pred_fallthru
    _
  // Predicated region
  $region6: #{roberta_classification_head.1} parent=0 // pred_check
    _
  $region7: #{roberta_classification_head.1} parent=0 // pred_check_branch
    %14 = sbr.rel (0) target = $region9
  $region8: #{roberta_classification_head.1} parent=0 // pred_region
    %s15 = scalar_lea.vmem %s1, 32
  $region9: #{roberta_classification_head.1} parent=0 // pred_fallthru
    _
  // Predicated region
  $region10: #{roberta_classification_head.1} parent=0 // pred_check
    _
  $region11: #{roberta_classification_head.1} parent=0 // pred_check_branch
    %17 = sbr.rel (0) target = $region13
  $region12: #{roberta_classification_head.1} parent=0 // pred_region
    _
  $region13: #{roberta_classification_head.1} parent=0 // pred_fallthru
    _
  // Predicated region
  $region14: #{roberta_classification_head.1} parent=0 // pred_check
    _
  $region15: #{roberta_classification_head.1} parent=0 // pred_check_branch
    %19 = sbr.rel (0) target = $region17
  $region16: #{roberta_classification_head.1} parent=0 // pred_region
    _
  $region17: #{roberta_classification_head.1} parent=0 // pred_fallthru
    _
  // Predicated region
  $region18: #{roberta_classification_head.1} parent=0 // pred_check
    _
  $region19: #{roberta_classification_head.1} parent=0 // pred_check_branch
    %21 = sbr.rel (0) target = $region21
  $region20: #{roberta_classification_head.1} parent=0 // pred_region
    _
  $region21: #{roberta_classification_head.1} parent=0 // pred_fallthru
    _
  // Predicated region
  $region22: #{roberta_classification_head.1} parent=0 // pred_check
    _
  $region23: #{roberta_classification_head.1} parent=0 // pred_check_branch
    %23 = sbr.rel (0) target = $region25
  $region24: #{roberta_classification_head.1} parent=0 // pred_region
    _
  $region25: #{roberta_classification_head.1} parent=0 // pred_fallthru
    _
  %s24 = scalar_lea.vmem %s1, 32
  %s25 = scalar_lea.vmem %s1, 32
  %v27 = vld [vmem:[%s0] sm:$0xf]
  %v28 = vpack.c.bf16 %v27, %v27
  %v29 = vld [vmem:[%s25] sm:$0xf]
  %v30 = vpack.c.bf16 %v29, %v29
  %v31 = vld [vmem:[%s2] sm:$0xf]
  %v32 = vld [vmem:[%s2 + $0x4] sm:$0xf]
  %v33 = vld [vmem:[%s2 + $0x8] sm:$0xf]
  %v34 = vld [vmem:[%s2 + $0xc] sm:$0xf]
  %v35 = vld [vmem:[%s2 + $0x10] sm:$0xf]
  %v36 = vld [vmem:[%s2 + $0x14] sm:$0xf]
  %v37 = vld [vmem:[%s2 + $0x18] sm:$0xf]
  %v38 = vld [vmem:[%s2 + $0x1c] sm:$0xf]
  %v39 = vld [vmem:[%s2 + $0x20] sm:$0xf]
  %v40 = vld [vmem:[%s2 + $0x24] sm:$0xf]
  %v41 = vld [vmem:[%s2 + $0x28] sm:$0xf]
  %v42 = vld [vmem:[%s2 + $0x2c] sm:$0xf]
  %v43 = vld [vmem:[%s2 + $0x30] sm:$0xf]
  %v44 = vld [vmem:[%s2 + $0x34] sm:$0xf]
  %v45 = vld [vmem:[%s2 + $0x38] sm:$0xf]
  %v46 = vld [vmem:[%s2 + $0x3c] sm:$0xf]
  %v63 = vunpack.c.l.b16 %v31
  %v64 = vunpack.c.l.b16 %v32
  %v65 = vunpack.c.l.b16 %v33
  %v66 = vunpack.c.l.b16 %v34
  %v67 = vunpack.c.l.b16 %v35
  %v68 = vunpack.c.l.b16 %v36
  %v69 = vunpack.c.l.b16 %v37
  %v70 = vunpack.c.l.b16 %v38
  %v71 = vunpack.c.l.b16 %v39
  %v72 = vunpack.c.l.b16 %v40
  %v73 = vunpack.c.l.b16 %v41
  %v74 = vunpack.c.l.b16 %v42
  %v75 = vunpack.c.l.b16 %v43
  %v76 = vunpack.c.l.b16 %v44
  %v77 = vunpack.c.l.b16 %v45
  %v78 = vunpack.c.l.b16 %v46
  %v79 = vpack.c.b16 %v64, %v63
  %v80 = vpack.c.b16 %v66, %v65
  %v81 = vpack.c.b16 %v68, %v67
  %v82 = vpack.c.b16 %v70, %v69
  %v83 = vpack.c.b16 %v72, %v71
  %v84 = vpack.c.b16 %v74, %v73
  %v85 = vpack.c.b16 %v76, %v75
  %v86 = vpack.c.b16 %v78, %v77
  %95 = vmatprep.subr.bf16.mxu0 0
  %96 = vmatpush1.bf16.msra.mxu0 %v86
  %97 = vmatprep.subr.bf16.mxu0 0
  %98 = vmatpush1.bf16.msra.mxu0 %v85
  %99 = vmatprep.subr.bf16.mxu0 0
  %100 = vmatpush1.bf16.msra.mxu0 %v84
  %101 = vmatprep.subr.bf16.mxu0 0
  %102 = vmatpush1.bf16.msra.mxu0 %v83
  %103 = vmatprep.subr.bf16.mxu0 0
  %104 = vmatpush1.bf16.msra.mxu0 %v82
  %105 = vmatprep.subr.bf16.mxu0 0
  %106 = vmatpush1.bf16.msra.mxu0 %v81
  %107 = vmatprep.subr.bf16.mxu0 0
  %108 = vmatpush1.bf16.msra.mxu0 %v80
  %109 = vmatprep.subr.bf16.mxu0 0
  %110 = vmatpush1.bf16.msra.mxu0 %v79
  %111 = vmatprep.subr.bf16.mxu0 0
  %112 = vmatpush2.bf16.msra.mxu0 0
  %113 = vmatprep.subr.bf16.mxu0 0
  %114 = vmatpush2.bf16.msra.mxu0 0
  %115 = vmatprep.subr.bf16.mxu0 0
  %116 = vmatpush2.bf16.msra.mxu0 0
  %117 = vmatprep.subr.bf16.mxu0 0
  %118 = vmatpush2.bf16.msra.mxu0 0
  %119 = vmatprep.subr.bf16.mxu0 0
  %120 = vmatpush2.bf16.msra.mxu0 0
  %121 = vmatprep.subr.bf16.mxu0 0
  %122 = vmatpush2.bf16.msra.mxu0 0
  %123 = vmatprep.subr.bf16.mxu0 0
  %124 = vmatpush2.bf16.msra.mxu0 0
  %125 = vmatprep.subr.bf16.mxu0 0
  %126 = vmatpush2.bf16.msra.mxu0 0
  %127 = vmatprep.mubr.bf16.mxu0 0
  %128 = vmatmul.mubr.bf16.gmra.mxu0 %v28
  %v129 = vpop.f32.mrf.mxu0
  %v130 = vadd.f32 0.0, %v129
  %v131 = vpop.f32.mrf.mxu0
  %v132 = vpop.f32.mrf.mxu0
  %v133 = vpop.f32.mrf.mxu0
  %134 = vdwg.mxu0
  %135 = vst [vmem:[#allocation2] sm:$0xf] %v130
  %v136 = vld [vmem:[#allocation2] sm:$0xf]
  %v137 = vld [vmem:[%s2 + $0x40] sm:$0xf]
  %v138 = vld [vmem:[%s2 + $0x44] sm:$0xf]
  %v139 = vld [vmem:[%s2 + $0x48] sm:$0xf]
  %v140 = vld [vmem:[%s2 + $0x4c] sm:$0xf]
  %v141 = vld [vmem:[%s2 + $0x50] sm:$0xf]
  %v142 = vld [vmem:[%s2 + $0x54] sm:$0xf]
  %v143 = vld [vmem:[%s2 + $0x58] sm:$0xf]
  %v144 = vld [vmem:[%s2 + $0x5c] sm:$0xf]
  %v145 = vld [vmem:[%s2 + $0x60] sm:$0xf]
  %v146 = vld [vmem:[%s2 + $0x64] sm:$0xf]
  %v147 = vld [vmem:[%s2 + $0x68] sm:$0xf]
  %v148 = vld [vmem:[%s2 + $0x6c] sm:$0xf]
  %v149 = vld [vmem:[%s2 + $0x70] sm:$0xf]
  %v150 = vld [vmem:[%s2 + $0x74] sm:$0xf]
  %v151 = vld [vmem:[%s2 + $0x78] sm:$0xf]
  %v152 = vld [vmem:[%s2 + $0x7c] sm:$0xf]
  %v169 = vunpack.c.l.b16 %v137
  %v170 = vunpack.c.l.b16 %v138
  %v171 = vunpack.c.l.b16 %v139
  %v172 = vunpack.c.l.b16 %v140
  %v173 = vunpack.c.l.b16 %v141
  %v174 = vunpack.c.l.b16 %v142
  %v175 = vunpack.c.l.b16 %v143
  %v176 = vunpack.c.l.b16 %v144
  %v177 = vunpack.c.l.b16 %v145
  %v178 = vunpack.c.l.b16 %v146
  %v179 = vunpack.c.l.b16 %v147
  %v180 = vunpack.c.l.b16 %v148
  %v181 = vunpack.c.l.b16 %v149
  %v182 = vunpack.c.l.b16 %v150
  %v183 = vunpack.c.l.b16 %v151
  %v184 = vunpack.c.l.b16 %v152
  %v185 = vpack.c.b16 %v170, %v169
  %v186 = vpack.c.b16 %v172, %v171
  %v187 = vpack.c.b16 %v174, %v173
  %v188 = vpack.c.b16 %v176, %v175
  %v189 = vpack.c.b16 %v178, %v177
  %v190 = vpack.c.b16 %v180, %v179
  %v191 = vpack.c.b16 %v182, %v181
  %v192 = vpack.c.b16 %v184, %v183
  %201 = vmatprep.subr.bf16.mxu0 0
  %202 = vmatpush1.bf16.msra.mxu0 %v192
  %203 = vmatprep.subr.bf16.mxu0 0
  %204 = vmatpush1.bf16.msra.mxu0 %v191
  %205 = vmatprep.subr.bf16.mxu0 0
  %206 = vmatpush1.bf16.msra.mxu0 %v190
  %207 = vmatprep.subr.bf16.mxu0 0
  %208 = vmatpush1.bf16.msra.mxu0 %v189
  %209 = vmatprep.subr.bf16.mxu0 0
  %210 = vmatpush1.bf16.msra.mxu0 %v188
  %211 = vmatprep.subr.bf16.mxu0 0
  %212 = vmatpush1.bf16.msra.mxu0 %v187
  %213 = vmatprep.subr.bf16.mxu0 0
  %214 = vmatpush1.bf16.msra.mxu0 %v186
  %215 = vmatprep.subr.bf16.mxu0 0
  %216 = vmatpush1.bf16.msra.mxu0 %v185
  %217 = vmatprep.subr.bf16.mxu0 0
  %218 = vmatpush2.bf16.msra.mxu0 0
  %219 = vmatprep.subr.bf16.mxu0 0
  %220 = vmatpush2.bf16.msra.mxu0 0
  %221 = vmatprep.subr.bf16.mxu0 0
  %222 = vmatpush2.bf16.msra.mxu0 0
  %223 = vmatprep.subr.bf16.mxu0 0
  %224 = vmatpush2.bf16.msra.mxu0 0
  %225 = vmatprep.subr.bf16.mxu0 0
  %226 = vmatpush2.bf16.msra.mxu0 0
  %227 = vmatprep.subr.bf16.mxu0 0
  %228 = vmatpush2.bf16.msra.mxu0 0
  %229 = vmatprep.subr.bf16.mxu0 0
  %230 = vmatpush2.bf16.msra.mxu0 0
  %231 = vmatprep.subr.bf16.mxu0 0
  %232 = vmatpush2.bf16.msra.mxu0 0
  %233 = vmatprep.mubr.bf16.mxu0 0
  %234 = vmatmul.mubr.bf16.gmra.mxu0 %v30
  %v235 = vpop.f32.mrf.mxu0
  %v236 = vadd.f32 0.0, %v235
  %v237 = vpop.f32.mrf.mxu0
  %v238 = vpop.f32.mrf.mxu0
  %v239 = vpop.f32.mrf.mxu0
  %240 = vdwg.mxu0
  %v241 = vadd.f32 %v136, %v236
  %242 = vst [vmem:[#allocation2] sm:$0xf] %v241
  %v243 = vld [vmem:[#allocation2] sm:$0xf]
  %v244 = vld [vmem:[%s3] sm:$0x1]
  %v246 = vlaneseq
  %v247 = vshrl.u32 %v246, 7
  %v248 = vsub.s32 0, %v247
  %v249 = vrot.slane %v244, %v248
  %v251 = vadd.f32 %v243, %v249
  %v252 = vpack.c.bf16 %v251, %v251
  %v253 = vtanh.bf16.pop %v252
  %v254 = vld [vmem:[%s4] sm:$0xf]
  %v255 = vld [vmem:[%s4 + $0x4] sm:$0xf]
  %v256 = vld [vmem:[%s4 + $0x8] sm:$0xf]
  %v257 = vld [vmem:[%s4 + $0xc] sm:$0xf]
  %v258 = vld [vmem:[%s4 + $0x10] sm:$0xf]
  %v259 = vld [vmem:[%s4 + $0x14] sm:$0xf]
  %v260 = vld [vmem:[%s4 + $0x18] sm:$0xf]
  %v261 = vld [vmem:[%s4 + $0x1c] sm:$0xf]
  %v262 = vld [vmem:[%s4 + $0x20] sm:$0xf]
  %v263 = vld [vmem:[%s4 + $0x24] sm:$0xf]
  %v264 = vld [vmem:[%s4 + $0x28] sm:$0xf]
  %v265 = vld [vmem:[%s4 + $0x2c] sm:$0xf]
  %v266 = vld [vmem:[%s4 + $0x30] sm:$0xf]
  %v267 = vld [vmem:[%s4 + $0x34] sm:$0xf]
  %v268 = vld [vmem:[%s4 + $0x38] sm:$0xf]
  %v269 = vld [vmem:[%s4 + $0x3c] sm:$0xf]
  %v270 = vld [vmem:[%s5] sm:$0x1]
  %v272 = vlaneseq
  %v273 = vshrl.u32 %v272, 7
  %v274 = vsub.s32 0, %v273
  %v275 = vrot.slane %v270, %v274
  %v293 = vunpack.c.l.b16 %v254
  %v294 = vunpack.c.l.b16 %v255
  %v295 = vunpack.c.l.b16 %v256
  %v296 = vunpack.c.l.b16 %v257
  %v297 = vunpack.c.l.b16 %v258
  %v298 = vunpack.c.l.b16 %v259
  %v299 = vunpack.c.l.b16 %v260
  %v300 = vunpack.c.l.b16 %v261
  %v301 = vunpack.c.l.b16 %v262
  %v302 = vunpack.c.l.b16 %v263
  %v303 = vunpack.c.l.b16 %v264
  %v304 = vunpack.c.l.b16 %v265
  %v305 = vunpack.c.l.b16 %v266
  %v306 = vunpack.c.l.b16 %v267
  %v307 = vunpack.c.l.b16 %v268
  %v308 = vunpack.c.l.b16 %v269
  %v309 = vpack.c.b16 %v294, %v293
  %v310 = vpack.c.b16 %v296, %v295
  %v311 = vpack.c.b16 %v298, %v297
  %v312 = vpack.c.b16 %v300, %v299
  %v313 = vpack.c.b16 %v302, %v301
  %v314 = vpack.c.b16 %v304, %v303
  %v315 = vpack.c.b16 %v306, %v305
  %v316 = vpack.c.b16 %v308, %v307
  %325 = vmatprep.subr.bf16.mxu0 0
  %326 = vmatpush1.bf16.msra.mxu0 %v316
  %327 = vmatprep.subr.bf16.mxu0 0
  %328 = vmatpush1.bf16.msra.mxu0 %v315
  %329 = vmatprep.subr.bf16.mxu0 0
  %330 = vmatpush1.bf16.msra.mxu0 %v314
  %331 = vmatprep.subr.bf16.mxu0 0
  %332 = vmatpush1.bf16.msra.mxu0 %v313
  %333 = vmatprep.subr.bf16.mxu0 0
  %334 = vmatpush1.bf16.msra.mxu0 %v312
  %335 = vmatprep.subr.bf16.mxu0 0
  %336 = vmatpush1.bf16.msra.mxu0 %v311
  %337 = vmatprep.subr.bf16.mxu0 0
  %338 = vmatpush1.bf16.msra.mxu0 %v310
  %339 = vmatprep.subr.bf16.mxu0 0
  %340 = vmatpush1.bf16.msra.mxu0 %v309
  %341 = vmatprep.subr.bf16.mxu0 0
  %342 = vmatpush2.bf16.msra.mxu0 0
  %343 = vmatprep.subr.bf16.mxu0 0
  %344 = vmatpush2.bf16.msra.mxu0 0
  %345 = vmatprep.subr.bf16.mxu0 0
  %346 = vmatpush2.bf16.msra.mxu0 0
  %347 = vmatprep.subr.bf16.mxu0 0
  %348 = vmatpush2.bf16.msra.mxu0 0
  %349 = vmatprep.subr.bf16.mxu0 0
  %350 = vmatpush2.bf16.msra.mxu0 0
  %351 = vmatprep.subr.bf16.mxu0 0
  %352 = vmatpush2.bf16.msra.mxu0 0
  %353 = vmatprep.subr.bf16.mxu0 0
  %354 = vmatpush2.bf16.msra.mxu0 0
  %355 = vmatprep.subr.bf16.mxu0 0
  %356 = vmatpush2.bf16.msra.mxu0 0
  %357 = vmatprep.mubr.bf16.mxu0 0
  %358 = vmatmul.mubr.bf16.gmra.mxu0 %v253
  %v359 = vpop.f32.mrf.mxu0
  %v360 = vadd.f32 %v275, %v359
  %v361 = vpop.f32.mrf.mxu0
  %v362 = vpop.f32.mrf.mxu0
  %v363 = vpop.f32.mrf.mxu0
  %364 = vdwg.mxu0
  %vm365 = vcmask 11264
  %366 = vst.msk [vmem:[%s6] sm:$0xf] %vm365, %v360
  // Predicated region
  $region26: #{roberta_classification_head.1} parent=0 // pred_check
    _
  $region27: #{roberta_classification_head.1} parent=0 // pred_check_branch
    %368 = sbr.rel (0) target = $region29
  $region28: #{roberta_classification_head.1} parent=0 // pred_region
    _
  $region29: #{roberta_classification_head.1} parent=0 // pred_fallthru
    _
  // Predicated region
  $region30: #{roberta_classification_head.1} parent=0 // pred_check
    _
  $region31: #{roberta_classification_head.1} parent=0 // pred_check_branch
    %370 = sbr.rel (0) target = $region33
  $region32: #{roberta_classification_head.1} parent=0 // pred_region
    _
  $region33: #{roberta_classification_head.1} parent=0 // pred_fallthru
    _

</llo_original>
